<compile_context>
chip_gen: v5e
topology: v5e:2x2
jax: 0.10.0
libtpu: 0.0.40
codegen_flags: <defaults>
</compile_context>

<pallas_src>
import jax
import jax.numpy as jnp
from jax.experimental import pallas as pl
from jax.experimental.pallas import tpu as pltpu


# ----------------------------- Pallas kernel -------------------------------

def _neg_scale_kernel(neg_lam_ref, g_ref, o_ref):
    # Backward: dx = (-lambda) * dy, elementwise on the VPU (HBM-bound).
    # Scalar lives in SMEM; cast once so bf16 tiles stay packed in bf16.
    scale = neg_lam_ref[0].astype(o_ref.dtype)
    o_ref[...] = g_ref[...] * scale


def _reversed_grad(g, lam):
    """Compute -lam * g.  lam is a traced f32 scalar (no recompiles on ramp)."""
    orig_shape = g.shape
    dtype = g.dtype
    total = g.size

    neg_lam_scalar = -lam.astype(jnp.float32)

    # Non-128-aligned (rare) or empty gradients: a single fused XLA multiply is
    # one read + one write — strictly cheaper than any pad/slice + kernel combo.
    if total == 0 or total % 128 != 0:
        return g * neg_lam_scalar.astype(dtype)

    # Lane-dense column count (multiple of 128) dividing the flat size.
    flat = g.reshape(-1)
    cols = 128
    for c in (1024, 512, 256, 128):
        if total % c == 0:
            cols = c
            break
    rows = total // cols
    g2d = flat.reshape(rows, cols)

    # Row tile: multiple of 8 sublanes, block <= ~8 MiB.  Pipeline footprint is
    # 2 in-bufs + 2 out-bufs = 4 * block <= 32 MiB, under the 48 MiB limit we
    # request below (v5e/v6e: 128 MiB physical VMEM; v7x: 64 MiB).
    itemsize = jnp.dtype(dtype).itemsize
    bytes_per_row = cols * itemsize
    max_rows = max(8, (8 * 1024 * 1024) // bytes_per_row)
    max_rows = max(8, (max_rows // 8) * 8)
    tile_rows = rows if rows <= max_rows else max_rows

    neg_lam = neg_lam_scalar.reshape(1)  # (1,) f32 SMEM operand

    out2d = pl.pallas_call(
        _neg_scale_kernel,
        out_shape=jax.ShapeDtypeStruct((rows, cols), dtype),
        grid=(pl.cdiv(rows, tile_rows),),
        in_specs=[
            pl.BlockSpec(memory_space=pltpu.MemorySpace.SMEM),   # -lambda scalar
            pl.BlockSpec((tile_rows, cols), lambda i: (i, 0)),   # grad tile
        ],
        out_specs=pl.BlockSpec((tile_rows, cols), lambda i: (i, 0)),
        input_output_aliases={1: 0},  # write dx in place of the grad buffer
        compiler_params=pltpu.CompilerParams(
            dimension_semantics=("parallel",),   # v7x: both TCs split the rows
            vmem_limit_bytes=48 * 1024 * 1024,
        ),
    )(neg_lam, g2d)

    return out2d.reshape(orig_shape)


# --------------------------- GRL with custom VJP ----------------------------

@jax.custom_vjp
def _grl(x, lam):
    """Forward is identity (like `x.view_as(x)`); backward is -lam * g."""
    del lam
    return x


def _grl_fwd(x, lam):
    # No kernel, no copy: identity forward; only the (traced) lambda is saved.
    return x, lam


def _grl_bwd(lam, g):
    return _reversed_grad(g, lam), jnp.zeros_like(lam)


_grl.defvjp(_grl_fwd, _grl_bwd)


def gradient_reversal(x, lambda_grl=1.0):
    """GRL: identity forward, -lambda_grl * grad backward.

    lambda_grl may be a Python float or a traced jnp scalar; either way it is
    a runtime operand of the backward kernel (no recompile when it changes
    under jit, provided it is passed in as an argument / traced value).
    """
    lam = jnp.asarray(lambda_grl, dtype=jnp.float32)
    return _grl(x, lam)


class GradientReversalLayer:
    """JAX/Pallas equivalent of the PyTorch GradientReversalLayer."""

    def __init__(self, lambda_grl: float = 1.0):
        self.lambda_grl = float(lambda_grl)

    def __call__(self, x, lambda_grl=None):
        lam = self.lambda_grl if lambda_grl is None else lambda_grl
        return gradient_reversal(x, lam)


# --------------------------------- demo ------------------------------------

if __name__ == "__main__":
    key = jax.random.PRNGKey(0)
    # NCHW, small shapes: batch=2, channels=4, spatial=16
    x = jax.random.normal(key, (2, 4, 16, 16), dtype=jnp.float32)

    layer = GradientReversalLayer(lambda_grl=1.0)

    # Forward: identity (no kernel launched).
    y = layer(x)
    jax.block_until_ready(y)
    assert y.shape == x.shape and y.dtype == x.dtype
    assert jnp.allclose(y, x), "forward must be identity"

    # Backward: grad of sum(y) wrt x should be -lambda_grl everywhere.
    grad_x = jax.grad(lambda a: jnp.sum(layer(a)))(x)
    jax.block_until_ready(grad_x)
    assert jnp.allclose(grad_x, -jnp.ones_like(x)), (
        "backward must be -lambda_grl * grad_output"
    )

    # Non-trivial lambda through the product rule: d/da sum(GRL(a)*a) = (1-λ)a.
    layer2 = GradientReversalLayer(lambda_grl=0.25)
    grad_x2 = jax.grad(lambda a: jnp.sum(layer2(a) * a))(x)
    jax.block_until_ready(grad_x2)
    assert jnp.allclose(grad_x2, x - 0.25 * x, atol=1e-6), (
        "backward must scale only the GRL branch by -lambda_grl"
    )

    # Traced lambda under jit: one compile serves every lambda value (DANN ramp).
    @jax.jit
    def grl_bwd(a, lam):
        return jax.grad(lambda z: jnp.sum(gradient_reversal(z, lam)))(a)

    g1 = grl_bwd(x, jnp.float32(0.5))
    g2 = grl_bwd(x, jnp.float32(2.0))   # no retrace: lam is a runtime operand
    jax.block_until_ready((g1, g2))
    assert jnp.allclose(g1, -0.5 * jnp.ones_like(x))
    assert jnp.allclose(g2, -2.0 * jnp.ones_like(x))

    # bf16 gradients stay in bf16 through the kernel.
    xb = x.astype(jnp.bfloat16)
    gb = jax.grad(lambda a: jnp.sum(layer(a).astype(jnp.float32)))(xb)
    jax.block_until_ready(gb)
    assert gb.dtype == jnp.bfloat16
    assert jnp.allclose(gb.astype(jnp.float32), -jnp.ones_like(x), atol=1e-2)

    print("KERNEL_OK")
</pallas_src>

<mosaic_0001>
module attributes {stable_mosaic.version = 11 : i64} {
  func.func @_neg_scale_kernel(%arg0: i32, %arg1: memref<1xf32, #tpu.memory_space<smem>>, %arg2: memref<2x1024xf32, #tpu.memory_space<vmem>>, %arg3: memref<2x1024xf32, #tpu.memory_space<vmem>>) attributes {dimension_semantics = [#tpu.dimension_semantics<parallel>], iteration_bounds = array<i64: 1>, scalar_prefetch = 0 : i64, scratch_operands = 0 : i64, tpu.core_type = #tpu.core_type<tc>, window_params = [{transform_indices = @transform_0, window_bounds = array<i64: 1>}, {transform_indices = @transform_1, window_bounds = array<i64: 2, 1024>}, {transform_indices = @transform_2, window_bounds = array<i64: 2, 1024>}]} {
    %c0 = arith.constant 0 : index
    %0 = memref.load %arg1[%c0] : memref<1xf32, #tpu.memory_space<smem>>
    %c0_0 = arith.constant 0 : index
    %c0_1 = arith.constant 0 : index
    %1 = vector.load %arg2[%c0_0, %c0_1] : memref<2x1024xf32, #tpu.memory_space<vmem>>, vector<2x1024xf32>
    %2 = vector.broadcast %0 : f32 to vector<2x1024xf32>
    %3 = arith.mulf %1, %2 : vector<2x1024xf32>
    %c0_2 = arith.constant 0 : index
    %c0_3 = arith.constant 0 : index
    %4 = vector.load %arg3[%c0_2, %c0_3] : memref<2x1024xf32, #tpu.memory_space<vmem>>, vector<2x1024xf32>
    tpu.vector_store %arg3[%c0_2, %c0_3], %3 {strides = array<i32>} : memref<2x1024xf32, #tpu.memory_space<vmem>>, vector<2x1024xf32>,
    return
  }
  func.func @transform_0(%arg0: i32) -> i32 {
    %c0_i32 = arith.constant 0 : i32
    %c0_i32_0 = arith.constant 0 : i32
    return %c0_i32 : i32
  }
  func.func @transform_1(%arg0: i32) -> (i32, i32) {
    %c0_i32 = arith.constant 0 : i32
    %c0_i32_0 = arith.constant 0 : i32
    return %arg0, %c0_i32 : i32, i32
  }
  func.func @transform_2(%arg0: i32) -> (i32, i32) {
    %c0_i32 = arith.constant 0 : i32
    %c0_i32_0 = arith.constant 0 : i32
    return %arg0, %c0_i32 : i32, i32
  }
}

</mosaic_0001>

<llo_original>
// kernel: tpu_custom_call.1
$region0: #{tpu_custom_call.1}
  #allocation0 [shape = 'u32[]', space=smem, size = 0x4, offset = 0x4, fixed_abs, tag = 'smem constant byte address 0x4 - core index']
  #allocation1 [shape = 'u32[72,128]{1,0:T(1,128)}', space=vmem, size = 0x9000, scoped, tag = 'internal scratch']
  #allocation2 [shape = 'f32[1]{0:T(128)S(6)}', space=smem, size = 0x200, scoped, tag = 'scoped memory for tpu_custom_call.1']
  %s0 = inlined_call_operand.<no memory space> [shape: f32[1], index: 0, kind: input, shape index: {}]
  %s1 = inlined_call_operand.hbm [shape: f32[2,1024], index: 1, kind: input, shape index: {}, may-alias: {1,2}]
  %s2 = inlined_call_operand.hbm [shape: f32[2,1024], index: 2, kind: output, shape index: {}, may-alias: {1,2}]
  %s3 = sld [smem:[#allocation0]]
  $region22: #{tpu_custom_call.1} parent=0
    _
  %s5 = ssub.s32 1, %s3
  %s6 = scalar_select 0, %s5, %s3
  %7 = sst [smem:[#allocation2]] %s0
  $region1: #{tpu_custom_call.1} parent=0
    #allocation3 [shape = 'u8[8192]{0}', space=vmem, size = 0x2000, scoped, tag = 'input window, operand 1, single buffered']
    #allocation4 [shape = 's32[1]{0}', space=sflag, size = 0x4, scoped, tag = 'scoped memory for tpu_custom_call.1']
    #allocation5 [shape = 's32[1]{0}', space=sflag, size = 0x4, scoped, tag = 'scoped memory for tpu_custom_call.1']
    #allocation6 [shape = 'u8[8192]{0}', space=vmem, size = 0x2000, scoped, tag = 'output window, operand 0, single buffered']
    %8 = vsyncpa [#allocation4], 0
    %9 = vsyncpa [#allocation5], 0
    // Predicated region
    $region2: #{tpu_custom_call.1} parent=1 // pred_check
      _
    $region3: #{tpu_custom_call.1} parent=1 // pred_check_branch
      %11 = sbr.rel (0) target = $region5
    $region4: #{tpu_custom_call.1} parent=1 // pred_region
      _
    $region5: #{tpu_custom_call.1} parent=1 // pred_fallthru
      _
    // Predicated region
    $region6: #{tpu_custom_call.1} parent=1 // pred_check
      _
    $region7: #{tpu_custom_call.1} parent=1 // pred_check_branch
      %13 = sbr.rel (0) target = $region9
    $region8: #{tpu_custom_call.1} parent=1 // pred_region
      %15 = vsyncadd [#allocation4], 0
      %s17 = sshll.u32 %s1, 4
      %s18 = int_to_ptr.hbm [resolvable:$true] %s17
      %s19 = sshll.u32 [#allocation3], 4
      %s20 = int_to_ptr.vmem [resolvable:$true] %s19
      %22 = dma.hbm_to_vmem [thread:$0]  %s18, 256, %s20, [#allocation4]
    $region9: #{tpu_custom_call.1} parent=1 // pred_fallthru
      _
    // Predicated region
    $region10: #{tpu_custom_call.1} parent=1 // pred_check
      _
    $region11: #{tpu_custom_call.1} parent=1 // pred_check_branch
      %24 = sbr.rel (0) target = $region13
    $region12: #{tpu_custom_call.1} parent=1 // pred_region
      %26 = dma.done [#allocation4], 256
    $region13: #{tpu_custom_call.1} parent=1 // pred_fallthru
      _
    %s27 = sld [smem:[#allocation2]]
    %v28 = vld [vmem:[#allocation3] sm:$0xff]
    %v29 = vld [vmem:[#allocation3 + $0x8] sm:$0xff]
    %v30 = vstv %s27
    %v31 = vmul.f32 %v28, %v30
    %v32 = vmul.f32 %v29, %v30
    %33 = vst [vmem:[#allocation6] sm:$0xff] %v31
    %34 = vst [vmem:[#allocation6 + $0x8] sm:$0xff] %v32
    // Predicated region
    $region14: #{tpu_custom_call.1} parent=1 // pred_check
      _
    $region15: #{tpu_custom_call.1} parent=1 // pred_check_branch
      %36 = sbr.rel (0) target = $region17
    $region16: #{tpu_custom_call.1} parent=1 // pred_region
      %38 = vsyncadd [#allocation5], 0
      %s40 = sshll.u32 [#allocation6], 4
      %s41 = int_to_ptr.vmem [resolvable:$true] %s40
      %s42 = sshll.u32 %s2, 4
      %s43 = int_to_ptr.hbm [resolvable:$true] %s42
      %45 = dma.vmem_to_hbm [thread:$0]  %s41, 256, %s43, [#allocation5]
    $region17: #{tpu_custom_call.1} parent=1 // pred_fallthru
      _
    // Predicated region
    $region18: #{tpu_custom_call.1} parent=1 // pred_check
      _
    $region19: #{tpu_custom_call.1} parent=1 // pred_check_branch
      %47 = sbr.rel (0) target = $region21
    $region20: #{tpu_custom_call.1} parent=1 // pred_region
      %49 = dma.done [#allocation5], 256
    $region21: #{tpu_custom_call.1} parent=1 // pred_fallthru
      _
    %50 = vsyncpa [#allocation4], 1
    %51 = vsyncpa [#allocation5], 1

</llo_original>
